<compile_context>
chip_gen: v5e
topology: v5e:2x2
jax: 0.10.0
libtpu: 0.0.40
codegen_flags: <defaults>
</compile_context>

<pallas_src>
import jax
import jax.numpy as jnp
from jax.experimental import pallas as pl
from jax.experimental.pallas import tpu as pltpu

LANE = 128


def _round_up(n, m):
    return ((n + m - 1) // m) * m


# ----------------------------------------------------------------------------
# Kernel
# ----------------------------------------------------------------------------
def critic_kernel(x_ref, a_ref, w1_ref, b1_ref, w2h_hbm, w2a_ref, b2_ref,
                  w3_ref, b3_ref, out_ref, w2h_vmem, dma_sem):
    # Kick off the fc2 weight DMA first so it overlaps with the fc1 matmul.
    w2h_copy = pltpu.make_async_copy(w2h_hbm, w2h_vmem, dma_sem)
    w2h_copy.start()

    # fc1(x) + ReLU   (bf16 MXU inputs, f32 accumulation, f32 elementwise).
    h1 = jnp.dot(x_ref[...].astype(jnp.bfloat16), w1_ref[...],
                 preferred_element_type=jnp.float32)
    h1 = jnp.maximum(h1 + b1_ref[...], 0.0)

    # fc2(concat([h1, a], 1)) + ReLU, written as two matmuls (no concat).
    # The small action-part matmul runs while the w2h DMA completes.
    h2 = jnp.dot(a_ref[...].astype(jnp.bfloat16), w2a_ref[...],
                 preferred_element_type=jnp.float32)
    w2h_copy.wait()
    h2 = h2 + jnp.dot(h1.astype(jnp.bfloat16), w2h_vmem[...],
                      preferred_element_type=jnp.float32)
    h2 = jnp.maximum(h2 + b2_ref[...], 0.0)

    # fc3: single output unit -> f32 lane reduction (XLU), no padded MXU tile.
    o = jnp.sum(h2 * w3_ref[...], axis=-1, keepdims=True) + b3_ref[0, 0]
    out_ref[...] = o.astype(out_ref.dtype)


# ----------------------------------------------------------------------------
# Host-side wrapper (a single pallas_call, nothing else)
# ----------------------------------------------------------------------------
def critic_forward(x, a, padded_params):
    """Pallas forward of Critic((x, a)); returns [batch, 1] float32."""
    w1, b1, w2h, w2a, b2, w3row, b3 = padded_params
    batch, input_dim = x.shape
    action_dim = a.shape[1]
    h1_p, h2_p = w2h.shape

    vmem = pl.BlockSpec(memory_space=pltpu.MemorySpace.VMEM)
    smem = pl.BlockSpec(memory_space=pltpu.MemorySpace.SMEM)
    hbm = pl.BlockSpec(memory_space=pl.ANY)   # fc2 weight: manual DMA overlap

    flops = 2 * batch * (input_dim * h1_p + h1_p * h2_p
                         + action_dim * h2_p + h2_p)
    bytes_accessed = sum(int(t.size) * t.dtype.itemsize
                         for t in (x, a, w1, b1, w2h, w2a, b2, w3row, b3))
    bytes_accessed += batch * 1 * 4  # output

    return pl.pallas_call(
        critic_kernel,
        out_shape=jax.ShapeDtypeStruct((batch, 1), jnp.float32),
        in_specs=[vmem, vmem, vmem, vmem, hbm, vmem, vmem, vmem, smem],
        out_specs=vmem,
        scratch_shapes=[pltpu.VMEM((h1_p, h2_p), jnp.bfloat16),
                        pltpu.SemaphoreType.DMA(())],
        cost_estimate=pl.CostEstimate(flops=flops, transcendentals=0,
                                      bytes_accessed=bytes_accessed),
    )(x, a, w1, b1, w2h, w2a, b2, w3row, b3)


# ----------------------------------------------------------------------------
# Parameters (PyTorch nn.Linear-style init at logical sizes) + one-time prep
# ----------------------------------------------------------------------------
def init_critic_params(key, input_dim, action_dim, hidden1=400, hidden2=300):
    """Logical (unpadded, f32) params, stored pre-transposed as [in, out]."""

    def linear(k, fan_in, fan_out):
        kw, kb = jax.random.split(k)
        bound = 1.0 / jnp.sqrt(jnp.float32(fan_in))
        w = jax.random.uniform(kw, (fan_in, fan_out), jnp.float32, -bound, bound)
        b = jax.random.uniform(kb, (1, fan_out), jnp.float32, -bound, bound)
        return w, b

    k1, k2, k3 = jax.random.split(key, 3)
    w1, b1 = linear(k1, input_dim, hidden1)
    w2, b2 = linear(k2, hidden1 + action_dim, hidden2)  # fc2 sees concat([h1, a])
    w3, b3 = linear(k3, hidden2, 1)
    return (w1, b1, w2, b2, w3, b3)


def prepare_params(params, input_dim, action_dim, hidden1, hidden2):
    """One-time prep: pad only the lane (output) dims to 128, keep contraction
    dims at their logical sizes, split w2, cast MXU weights to bf16, and store
    the fc3 weight as a single f32 row."""
    w1, b1, w2, b2, w3, b3 = params
    h1_p = _round_up(hidden1, LANE)   # 400 -> 512
    h2_p = _round_up(hidden2, LANE)   # 300 -> 384

    w2h = w2[:hidden1, :]   # multiplies h1
    w2a = w2[hidden1:, :]   # multiplies a

    def pad2(m, rows, cols):
        return jnp.pad(m, ((0, rows - m.shape[0]), (0, cols - m.shape[1])))

    return (
        pad2(w1, input_dim, h1_p).astype(jnp.bfloat16),    # (in,   512) bf16
        pad2(b1, 1, h1_p),                                  # (1,    512) f32
        pad2(w2h, h1_p, h2_p).astype(jnp.bfloat16),         # (512,  384) bf16
        pad2(w2a, action_dim, h2_p).astype(jnp.bfloat16),   # (act,  384) bf16
        pad2(b2, 1, h2_p),                                  # (1,    384) f32
        pad2(w3.T, 1, h2_p),                                # (1,    384) f32 row
        jnp.reshape(b3, (1, 1)).astype(jnp.float32),        # (1, 1) f32 (SMEM)
    )


# ----------------------------------------------------------------------------
# References
# ----------------------------------------------------------------------------
def critic_forward_ref_f32(x, a, params):
    """Pure f32 reference of the PyTorch module semantics."""
    w1, b1, w2, b2, w3, b3 = params
    h1 = jnp.maximum(x @ w1 + b1, 0.0)
    h2 = jnp.maximum(jnp.concatenate([h1, a], axis=1) @ w2 + b2, 0.0)
    return h2 @ w3 + b3


def critic_forward_ref_bf16(x, a, params):
    """Reference matching the kernel's bf16-in / f32-accumulate matmuls
    (fc3 stays in f32, as in the kernel's lane reduction)."""
    w1, b1, w2, b2, w3, b3 = params
    bf = lambda t: t.astype(jnp.bfloat16).astype(jnp.float32)
    h1 = jnp.maximum(bf(x) @ bf(w1) + b1, 0.0)
    h2 = jnp.maximum(
        jnp.concatenate([bf(h1), bf(a)], axis=1) @ bf(w2) + b2, 0.0)
    return h2 @ w3 + b3


# ----------------------------------------------------------------------------
if __name__ == "__main__":
    batch = 4
    input_dim = 32
    action_dim = 8
    hidden1, hidden2 = 400, 300

    key = jax.random.PRNGKey(0)
    kx, ka, kp = jax.random.split(key, 3)
    x = jax.random.normal(kx, (batch, input_dim), jnp.float32)
    a = jax.random.normal(ka, (batch, action_dim), jnp.float32)

    params = init_critic_params(kp, input_dim, action_dim, hidden1, hidden2)
    padded_params = prepare_params(params, input_dim, action_dim,
                                   hidden1, hidden2)

    out = critic_forward(x, a, padded_params)
    out = jax.block_until_ready(out)
    assert out.shape == (batch, 1)

    # Tight check against a bf16-matched reference (same rounding as kernel).
    ref_bf16 = critic_forward_ref_bf16(x, a, params)
    assert jnp.allclose(out, ref_bf16, atol=2e-3, rtol=2e-3)

    # Loose check against the full-f32 module semantics (bf16 weight rounding).
    ref_f32 = critic_forward_ref_f32(x, a, params)
    assert jnp.allclose(out, ref_f32, atol=5e-2, rtol=5e-2)

    print("KERNEL_OK")
</pallas_src>

<mosaic_0001>
module attributes {stable_mosaic.version = 11 : i64} {
  func.func @critic_kernel(%arg0: memref<4x32xf32, #tpu.memory_space<vmem>>, %arg1: memref<4x8xf32, #tpu.memory_space<vmem>>, %arg2: memref<32x512xbf16, #tpu.memory_space<vmem>>, %arg3: memref<1x512xf32, #tpu.memory_space<vmem>>, %arg4: memref<512x384xbf16, #tpu.memory_space<any>>, %arg5: memref<8x384xbf16, #tpu.memory_space<vmem>>, %arg6: memref<1x384xf32, #tpu.memory_space<vmem>>, %arg7: memref<1x384xf32, #tpu.memory_space<vmem>>, %arg8: memref<1x1xf32, #tpu.memory_space<smem>>, %arg9: memref<4x1xf32, #tpu.memory_space<vmem>>, %arg10: memref<512x384xbf16, #tpu.memory_space<vmem>>, %arg11: memref<!tpu.dma_semaphore, #tpu.memory_space<semaphore_mem>>) attributes {dimension_semantics = [], scalar_prefetch = 0 : i64, scratch_operands = 2 : i64, tpu.core_type = #tpu.core_type<tc>} {
    tpu.enqueue_dma source(%arg4 : memref<512x384xbf16, #tpu.memory_space<any>>) target(%arg10 : memref<512x384xbf16, #tpu.memory_space<vmem>>) target_semaphore(%arg11 : memref<!tpu.dma_semaphore, #tpu.memory_space<semaphore_mem>>)
    %c0 = arith.constant 0 : index
    %c0_0 = arith.constant 0 : index
    %0 = vector.load %arg0[%c0, %c0_0] : memref<4x32xf32, #tpu.memory_space<vmem>>, vector<4x32xf32>
    %1 = arith.truncf %0 : vector<4x32xf32> to vector<4x32xbf16>
    %c0_1 = arith.constant 0 : index
    %c0_2 = arith.constant 0 : index
    %2 = vector.load %arg2[%c0_1, %c0_2] : memref<32x512xbf16, #tpu.memory_space<vmem>>, vector<32x512xbf16>
    %cst = arith.constant dense<0.000000e+00> : vector<4x512xf32>
    %3 = tpu.matmul %1, %2, %cst {dimension_numbers = #tpu.dot_dimension_numbers<[1], [0], [0], [1], [0, 0, 1, 1], [], []>} : vector<4x32xbf16>, vector<32x512xbf16>, vector<4x512xf32> -> vector<4x512xf32>
    %c0_3 = arith.constant 0 : index
    %c0_4 = arith.constant 0 : index
    %4 = vector.load %arg3[%c0_3, %c0_4] : memref<1x512xf32, #tpu.memory_space<vmem>>, vector<1x512xf32>
    %5 = vector.broadcast %4 : vector<1x512xf32> to vector<4x512xf32>
    %6 = arith.addf %3, %5 : vector<4x512xf32>
    %cst_5 = arith.constant 0.000000e+00 : f32
    %7 = vector.broadcast %cst_5 : f32 to vector<4x512xf32>
    %8 = arith.maximumf %6, %7 : vector<4x512xf32>
    %c0_6 = arith.constant 0 : index
    %c0_7 = arith.constant 0 : index
    %9 = vector.load %arg1[%c0_6, %c0_7] : memref<4x8xf32, #tpu.memory_space<vmem>>, vector<4x8xf32>
    %10 = arith.truncf %9 : vector<4x8xf32> to vector<4x8xbf16>
    %c0_8 = arith.constant 0 : index
    %c0_9 = arith.constant 0 : index
    %11 = vector.load %arg5[%c0_8, %c0_9] : memref<8x384xbf16, #tpu.memory_space<vmem>>, vector<8x384xbf16>
    %cst_10 = arith.constant dense<0.000000e+00> : vector<4x384xf32>
    %12 = tpu.matmul %10, %11, %cst_10 {dimension_numbers = #tpu.dot_dimension_numbers<[1], [0], [0], [1], [0, 0, 1, 1], [], []>} : vector<4x8xbf16>, vector<8x384xbf16>, vector<4x384xf32> -> vector<4x384xf32>
    tpu.wait_dma2 semaphore(%arg11 : memref<!tpu.dma_semaphore, #tpu.memory_space<semaphore_mem>>) src(%arg4 : memref<512x384xbf16, #tpu.memory_space<any>>) dst(%arg10 : memref<512x384xbf16, #tpu.memory_space<vmem>>)
    %13 = arith.truncf %8 : vector<4x512xf32> to vector<4x512xbf16>
    %c0_11 = arith.constant 0 : index
    %c0_12 = arith.constant 0 : index
    %14 = vector.load %arg10[%c0_11, %c0_12] : memref<512x384xbf16, #tpu.memory_space<vmem>>, vector<512x384xbf16>
    %cst_13 = arith.constant dense<0.000000e+00> : vector<4x384xf32>
    %15 = tpu.matmul %13, %14, %cst_13 {dimension_numbers = #tpu.dot_dimension_numbers<[1], [0], [0], [1], [0, 0, 1, 1], [], []>} : vector<4x512xbf16>, vector<512x384xbf16>, vector<4x384xf32> -> vector<4x384xf32>
    %16 = arith.addf %12, %15 : vector<4x384xf32>
    %c0_14 = arith.constant 0 : index
    %c0_15 = arith.constant 0 : index
    %17 = vector.load %arg6[%c0_14, %c0_15] : memref<1x384xf32, #tpu.memory_space<vmem>>, vector<1x384xf32>
    %18 = vector.broadcast %17 : vector<1x384xf32> to vector<4x384xf32>
    %19 = arith.addf %16, %18 : vector<4x384xf32>
    %cst_16 = arith.constant 0.000000e+00 : f32
    %20 = vector.broadcast %cst_16 : f32 to vector<4x384xf32>
    %21 = arith.maximumf %19, %20 : vector<4x384xf32>
    %c0_17 = arith.constant 0 : index
    %c0_18 = arith.constant 0 : index
    %22 = vector.load %arg7[%c0_17, %c0_18] : memref<1x384xf32, #tpu.memory_space<vmem>>, vector<1x384xf32>
    %23 = vector.broadcast %22 : vector<1x384xf32> to vector<4x384xf32>
    %24 = arith.mulf %21, %23 : vector<4x384xf32>
    %cst_19 = arith.constant dense<0.000000e+00> : vector<4xf32>
    %25 = vector.multi_reduction <add>, %24, %cst_19 [1] : vector<4x384xf32> to vector<4xf32>
    %26 = vector.shape_cast %25 : vector<4xf32> to vector<4x1xf32>
    %c0_20 = arith.constant 0 : index
    %c0_21 = arith.constant 0 : index
    %27 = memref.load %arg8[%c0_20, %c0_21] : memref<1x1xf32, #tpu.memory_space<smem>>
    %28 = vector.broadcast %27 : f32 to vector<4x1xf32>
    %29 = arith.addf %26, %28 : vector<4x1xf32>
    %c0_22 = arith.constant 0 : index
    %c0_23 = arith.constant 0 : index
    %30 = vector.load %arg9[%c0_22, %c0_23] : memref<4x1xf32, #tpu.memory_space<vmem>>, vector<4x1xf32>
    tpu.vector_store %arg9[%c0_22, %c0_23], %29 {strides = array<i32>} : memref<4x1xf32, #tpu.memory_space<vmem>>, vector<4x1xf32>,
    return
  }
}

</mosaic_0001>

<llo_original>
// kernel: tpu_custom_call.1
$region0: #{tpu_custom_call.1}
  #allocation0 [shape = 'u32[]', space=smem, size = 0x4, offset = 0x4, fixed_abs, tag = 'smem constant byte address 0x4 - core index']
  #allocation1 [shape = 'u32[72,128]{1,0:T(1,128)}', space=vmem, size = 0x9000, scoped, tag = 'internal scratch']
  #allocation2 [shape = 'bf16[512,384]{1,0:T(8,128)(2,1)}', space=vmem, size = 0x60000, scoped, tag = 'scratch operand']
  #allocation3 [shape = 's32[1]{0}', space=sflag, size = 0x4, scoped, tag = 'scratch operand']
  #allocation4 [shape = 'f32[1,1]{1,0:T(1,128)S(6)}', space=smem, size = 0x200, scoped, tag = 'scoped memory for tpu_custom_call.1']
  #allocation13 [shape = 's32[]', space=sflag, size = 0x4, offset = 0, fixed_abs, tag = 'sflag constant byte address 0x0 - dummy sync flag']
  #allocation14 [shape = 's32[]', space=sflag, size = 0x4, offset = 0, fixed_abs, tag = 'sflag constant byte address 0x0 - dummy sync flag']
  #allocation15 [shape = 'u32[]', space=smem, size = 0x4, offset = 0x44, fixed_abs, tag = 'smem constant byte address 0x44 - assertion arg 0']
  #allocation16 [shape = 'u32[]', space=smem, size = 0x4, offset = 0x48, fixed_abs, tag = 'smem constant byte address 0x48 - assertion arg 1']
  %s0 = inlined_call_operand.hbm [shape: f32[4,32], index: 0, kind: input, shape index: {}]
  %s1 = inlined_call_operand.hbm [shape: f32[4,8], index: 1, kind: input, shape index: {}]
  %s2 = inlined_call_operand.hbm [shape: bf16[32,512], index: 2, kind: input, shape index: {}]
  %s3 = inlined_call_operand.vmem [shape: f32[1,512], index: 3, kind: input, shape index: {}]
  %s4 = inlined_call_operand.hbm [shape: bf16[512,384], index: 4, kind: input, shape index: {}]
  %s5 = inlined_call_operand.hbm [shape: bf16[8,384], index: 5, kind: input, shape index: {}]
  %s6 = inlined_call_operand.vmem [shape: f32[1,384], index: 6, kind: input, shape index: {}]
  %s7 = inlined_call_operand.hbm [shape: f32[1,384], index: 7, kind: input, shape index: {}]
  %s8 = inlined_call_operand.<no memory space> [shape: f32[1,1], index: 8, kind: input, shape index: {}]
  %s9 = inlined_call_operand.vmem [shape: f32[4,1], index: 9, kind: output, shape index: {}]
  %s10 = sld [smem:[#allocation0]]
  $region66: #{tpu_custom_call.1} parent=0
    _
  %s12 = ssub.s32 1, %s10
  %s13 = scalar_select 0, %s12, %s10
  %14 = sst [smem:[#allocation4]] %s8
  $region1: #{tpu_custom_call.1} parent=0
    #allocation5 [shape = 'u8[2048]{0}', space=vmem, size = 0x800, scoped, tag = 'input window, operand 0, single buffered']
    #allocation6 [shape = 's32[1]{0}', space=sflag, size = 0x4, scoped, tag = 'scoped memory for tpu_custom_call.1']
    #allocation7 [shape = 'u8[2048]{0}', space=vmem, size = 0x800, scoped, tag = 'input window, operand 1, single buffered']
    #allocation8 [shape = 's32[1]{0}', space=sflag, size = 0x4, scoped, tag = 'scoped memory for tpu_custom_call.1']
    #allocation9 [shape = 'u8[32768]{0}', space=vmem, size = 0x8000, scoped, tag = 'input window, operand 2, single buffered']
    #allocation10 [shape = 'u8[6144]{0}', space=vmem, size = 0x1800, scoped, tag = 'input window, operand 5, single buffered']
    #allocation11 [shape = 's32[1]{0}', space=sflag, size = 0x4, scoped, tag = 'scoped memory for tpu_custom_call.1']
    #allocation12 [shape = 'u8[1536]{0}', space=vmem, size = 0x800, scoped, tag = 'input window, operand 7, single buffered']
    %15 = vsyncpa [#allocation6], 0
    %16 = vsyncpa [#allocation8], 0
    %17 = vsyncpa [#allocation11], 0
    // Predicated region
    $region2: #{tpu_custom_call.1} parent=1 // pred_check
      _
    $region3: #{tpu_custom_call.1} parent=1 // pred_check_branch
      %19 = sbr.rel (0) target = $region5
    $region4: #{tpu_custom_call.1} parent=1 // pred_region
      %21 = vsyncadd [#allocation6], 0
      %s23 = sshll.u32 %s0, 4
      %s24 = int_to_ptr.hbm [resolvable:$true] %s23
      %s25 = sshll.u32 [#allocation5], 4
      %s26 = int_to_ptr.vmem [resolvable:$true] %s25
      %28 = dma.hbm_to_vmem [thread:$0]  %s24, 64, %s26, [#allocation6]
    $region5: #{tpu_custom_call.1} parent=1 // pred_fallthru
      _
    // Predicated region
    $region6: #{tpu_custom_call.1} parent=1 // pred_check
      _
    $region7: #{tpu_custom_call.1} parent=1 // pred_check_branch
      %30 = sbr.rel (0) target = $region9
    $region8: #{tpu_custom_call.1} parent=1 // pred_region
      %32 = vsyncadd [#allocation8], 0
      %s34 = sshll.u32 %s1, 4
      %s35 = int_to_ptr.hbm [resolvable:$true] %s34
      %s36 = sshll.u32 [#allocation7], 4
      %s37 = int_to_ptr.vmem [resolvable:$true] %s36
      %39 = dma.hbm_to_vmem [thread:$0]  %s35, 64, %s37, [#allocation8]
    $region9: #{tpu_custom_call.1} parent=1 // pred_fallthru
      _
    // Predicated region
    $region10: #{tpu_custom_call.1} parent=1 // pred_check
      _
    $region11: #{tpu_custom_call.1} parent=1 // pred_check_branch
      %41 = sbr.rel (0) target = $region13
    $region12: #{tpu_custom_call.1} parent=1 // pred_region
      %43 = vsyncadd [#allocation8], 0
      %s44 = sshll.u32 %s2, 4
      %s45 = int_to_ptr.hbm [resolvable:$true] %s44
      %s46 = sshll.u32 [#allocation9], 4
      %s47 = int_to_ptr.vmem [resolvable:$true] %s46
      %52 = dma.hbm_to_vmem [thread:$0]  %s45, 1024, %s47, [#allocation8], 256, 256, 16
    $region13: #{tpu_custom_call.1} parent=1 // pred_fallthru
      _
    // Predicated region
    $region14: #{tpu_custom_call.1} parent=1 // pred_check
      _
    $region15: #{tpu_custom_call.1} parent=1 // pred_check_branch
      %54 = sbr.rel (0) target = $region17
    $region16: #{tpu_custom_call.1} parent=1 // pred_region
      _
    $region17: #{tpu_custom_call.1} parent=1 // pred_fallthru
      _
    // Predicated region
    $region18: #{tpu_custom_call.1} parent=1 // pred_check
      _
    $region19: #{tpu_custom_call.1} parent=1 // pred_check_branch
      %56 = sbr.rel (0) target = $region21
    $region20: #{tpu_custom_call.1} parent=1 // pred_region
      %58 = vsyncadd [#allocation11], 0
      %s60 = sshll.u32 %s5, 4
      %s61 = int_to_ptr.hbm [resolvable:$true] %s60
      %s62 = sshll.u32 [#allocation10], 4
      %s63 = int_to_ptr.vmem [resolvable:$true] %s62
      %65 = dma.hbm_to_vmem [thread:$0]  %s61, 192, %s63, [#allocation11]
    $region21: #{tpu_custom_call.1} parent=1 // pred_fallthru
      _
    // Predicated region
    $region22: #{tpu_custom_call.1} parent=1 // pred_check
      _
    $region23: #{tpu_custom_call.1} parent=1 // pred_check_branch
      %67 = sbr.rel (0) target = $region25
    $region24: #{tpu_custom_call.1} parent=1 // pred_region
      _
    $region25: #{tpu_custom_call.1} parent=1 // pred_fallthru
      _
    // Predicated region
    $region26: #{tpu_custom_call.1} parent=1 // pred_check
      _
    $region27: #{tpu_custom_call.1} parent=1 // pred_check_branch
      %69 = sbr.rel (0) target = $region29
    $region28: #{tpu_custom_call.1} parent=1 // pred_region
      %71 = vsyncadd [#allocation11], 0
      %s73 = sshll.u32 %s7, 4
      %s74 = int_to_ptr.hbm [resolvable:$true] %s73
      %s75 = sshll.u32 [#allocation12], 4
      %s76 = int_to_ptr.vmem [resolvable:$true] %s75
      %78 = dma.hbm_to_vmem [thread:$0]  %s74, 48, %s76, [#allocation11]
    $region29: #{tpu_custom_call.1} parent=1 // pred_fallthru
      _
    // Predicated region
    $region30: #{tpu_custom_call.1} parent=1 // pred_check
      _
    $region31: #{tpu_custom_call.1} parent=1 // pred_check_branch
      %80 = sbr.rel (0) target = $region33
    $region32: #{tpu_custom_call.1} parent=1 // pred_region
      _
    $region33: #{tpu_custom_call.1} parent=1 // pred_fallthru
      _
    // Predicated region
    $region34: #{tpu_custom_call.1} parent=1 // pred_check
      _
    $region35: #{tpu_custom_call.1} parent=1 // pred_check_branch
      %82 = sbr.rel (0) target = $region37
    $region36: #{tpu_custom_call.1} parent=1 // pred_region
      %84 = dma.done [#allocation6], 64
    $region37: #{tpu_custom_call.1} parent=1 // pred_fallthru
      _
    // Predicated region
    $region38: #{tpu_custom_call.1} parent=1 // pred_check
      _
    $region39: #{tpu_custom_call.1} parent=1 // pred_check_branch
      %86 = sbr.rel (0) target = $region41
    $region40: #{tpu_custom_call.1} parent=1 // pred_region
      %88 = dma.done [#allocation8], 64
    $region41: #{tpu_custom_call.1} parent=1 // pred_fallthru
      _
    // Predicated region
    $region42: #{tpu_custom_call.1} parent=1 // pred_check
      _
    $region43: #{tpu_custom_call.1} parent=1 // pred_check_branch
      %90 = sbr.rel (0) target = $region45
    $region44: #{tpu_custom_call.1} parent=1 // pred_region
      %92 = dma.done [#allocation8], 1024
    $region45: #{tpu_custom_call.1} parent=1 // pred_fallthru
      _
    // Predicated region
    $region46: #{tpu_custom_call.1} parent=1 // pred_check
      _
    $region47: #{tpu_custom_call.1} parent=1 // pred_check_branch
      %94 = sbr.rel (0) target = $region49
    $region48: #{tpu_custom_call.1} parent=1 // pred_region
      %96 = dma.done [#allocation11], 192
    $region49: #{tpu_custom_call.1} parent=1 // pred_fallthru
      _
    // Predicated region
    $region50: #{tpu_custom_call.1} parent=1 // pred_check
      _
    $region51: #{tpu_custom_call.1} parent=1 // pred_check_branch
      %98 = sbr.rel (0) target = $region53
    $region52: #{tpu_custom_call.1} parent=1 // pred_region
      %100 = dma.done [#allocation11], 48
    $region53: #{tpu_custom_call.1} parent=1 // pred_fallthru
      _
    // Predicated region
    $region54: #{tpu_custom_call.1} parent=1 // pred_check
      _
    $region55: #{tpu_custom_call.1} parent=1 // pred_check_branch
      %103 = sbr.rel target = $region57
    $region56: #{tpu_custom_call.1} parent=1 // pred_region
      %104 = sst [smem:[#allocation15]] [#allocation14]
      %105 = sst [smem:[#allocation16]] [#allocation13]
    $region57: #{tpu_custom_call.1} parent=1 // pred_fallthru
      _
    %107 = shalt.err (0)
    %s109 = sshll.u32 %s4, 4
    %s110 = int_to_ptr.hbm [resolvable:$true] %s109
    %s111 = sshll.u32 [#allocation2], 4
    %s112 = int_to_ptr.vmem [resolvable:$true] %s111
    %114 = dma.hbm_to_vmem [thread:$0]  %s110, 12288, %s112, [#allocation3]
    %v115 = vld [vmem:[#allocation5] sm:$0xf]
    %v116 = vpack.c.bf16 %v115, %v115
    %v117 = vld [vmem:[#allocation9] sm:$0xff]
    %v118 = vld [vmem:[#allocation9 + $0x8] sm:$0xff]
    %v119 = vld [vmem:[#allocation9 + $0x10] sm:$0xff]
    %v120 = vld [vmem:[#allocation9 + $0x18] sm:$0xff]
    %v121 = vld [vmem:[#allocation9 + $0x20] sm:$0xff]
    %v122 = vld [vmem:[#allocation9 + $0x28] sm:$0xff]
    %v123 = vld [vmem:[#allocation9 + $0x30] sm:$0xff]
    %v124 = vld [vmem:[#allocation9 + $0x38] sm:$0xff]
    %v125 = vld [vmem:[%s3] sm:$0xf]
    %v127 = vperm.slane %v125, 0
    %v128 = vperm.slane %v125, 1
    %v129 = vperm.slane %v125, 2
    %v130 = vperm.slane %v125, 3
    %v143 = vunpack.c.l.b16 %v117
    %v144 = vunpack.c.h.b16 %v117
    %v145 = vunpack.c.l.b16 %v118
    %v146 = vunpack.c.h.b16 %v118
    %v147 = vunpack.c.l.b16 %v119
    %v148 = vunpack.c.h.b16 %v119
    %v149 = vunpack.c.l.b16 %v120
    %v150 = vunpack.c.h.b16 %v120
    %v151 = vunpack.c.l.b16 %v121
    %v152 = vunpack.c.h.b16 %v121
    %v153 = vunpack.c.l.b16 %v122
    %v154 = vunpack.c.h.b16 %v122
    %v155 = vunpack.c.l.b16 %v123
    %v156 = vunpack.c.h.b16 %v123
    %v157 = vunpack.c.l.b16 %v124
    %v158 = vunpack.c.h.b16 %v124
    %v159 = vpack.c.b16 %v147, %v143
    %v160 = vpack.c.b16 %v148, %v144
    %v161 = vpack.c.b16 %v149, %v145
    %v162 = vpack.c.b16 %v150, %v146
    %v163 = vpack.c.b16 %v155, %v151
    %v164 = vpack.c.b16 %v156, %v152
    %v165 = vpack.c.b16 %v157, %v153
    %v166 = vpack.c.b16 %v158, %v154
    %vm175 = vcmask 261120
    %v177 = vsel %vm175, %v116, 0
    %179 = vmatpush.bf16.msra.mxu0 0
    %180 = vmatpush.bf16.msra.mxu0 0
    %181 = vmatpush.bf16.msra.mxu0 0
    %182 = vmatpush.bf16.msra.mxu0 0
    %183 = vmatpush.bf16.msra.mxu0 0
    %184 = vmatpush.bf16.msra.mxu0 0
    %185 = vmatpush.bf16.msra.mxu0 %v163
    %186 = vmatpush.bf16.msra.mxu0 %v159
    %187 = vmatmul.bf16.gmra.mxu0 %v177
    %v188 = vpop.f32.mrf.mxu0
    %v189 = vadd.f32 %v127, %v188
    %v190 = vpop.f32.mrf.mxu0
    %191 = vdwg.mxu0
    %192 = vmatpush.bf16.msra.mxu0 0
    %193 = vmatpush.bf16.msra.mxu0 0
    %194 = vmatpush.bf16.msra.mxu0 0
    %195 = vmatpush.bf16.msra.mxu0 0
    %196 = vmatpush.bf16.msra.mxu0 0
    %197 = vmatpush.bf16.msra.mxu0 0
    %198 = vmatpush.bf16.msra.mxu0 %v164
    %199 = vmatpush.bf16.msra.mxu0 %v160
    %200 = vmatmul.bf16.gmra.mxu0 %v177
    %v201 = vpop.f32.mrf.mxu0
    %v202 = vadd.f32 %v128, %v201
    %v203 = vpop.f32.mrf.mxu0
    %204 = vdwg.mxu0
    %205 = vmatpush.bf16.msra.mxu0 0
    %206 = vmatpush.bf16.msra.mxu0 0
    %207 = vmatpush.bf16.msra.mxu0 0
    %208 = vmatpush.bf16.msra.mxu0 0
    %209 = vmatpush.bf16.msra.mxu0 0
    %210 = vmatpush.bf16.msra.mxu0 0
    %211 = vmatpush.bf16.msra.mxu0 %v165
    %212 = vmatpush.bf16.msra.mxu0 %v161
    %213 = vmatmul.bf16.gmra.mxu0 %v177
    %v214 = vpop.f32.mrf.mxu0
    %v215 = vadd.f32 %v129, %v214
    %v216 = vpop.f32.mrf.mxu0
    %217 = vdwg.mxu0
    %218 = vmatpush.bf16.msra.mxu0 0
    %219 = vmatpush.bf16.msra.mxu0 0
    %220 = vmatpush.bf16.msra.mxu0 0
    %221 = vmatpush.bf16.msra.mxu0 0
    %222 = vmatpush.bf16.msra.mxu0 0
    %223 = vmatpush.bf16.msra.mxu0 0
    %224 = vmatpush.bf16.msra.mxu0 %v166
    %225 = vmatpush.bf16.msra.mxu0 %v162
    %226 = vmatmul.bf16.gmra.mxu0 %v177
    %v227 = vpop.f32.mrf.mxu0
    %v228 = vadd.f32 %v130, %v227
    %v229 = vpop.f32.mrf.mxu0
    %230 = vdwg.mxu0
    %v231 = vmax.f32 %v189, 0.0
    %v232 = vmax.f32 %v202, 0.0
    %v233 = vmax.f32 %v215, 0.0
    %v234 = vmax.f32 %v228, 0.0
    %v235 = vld [vmem:[#allocation7] sm:$0xf]
    %v236 = vpack.c.bf16 %v235, %v235
    %v237 = vld [vmem:[#allocation10] sm:$0xff]
    %v238 = vld [vmem:[#allocation10 + $0x8] sm:$0xf]
    %s239 = smul.u32 4, 64
    %s240 = smul.u32 %s239, 3
    %s241 = sshll.u32 %s240, 4
    %242 = dma.done [#allocation3], %s241
    %v243 = vpack.c.bf16 %v231, %v231
    %v244 = vpack.c.bf16 %v232, %v232
    %v245 = vpack.c.bf16 %v233, %v233
    %v246 = vpack.c.bf16 %v234, %v234
    %v247 = vld [vmem:[#allocation2] sm:$0xff]
    %v248 = vld [vmem:[#allocation2 + $0x8] sm:$0xf]
    %v249 = vld [vmem:[#allocation2 + $0xc] sm:$0xff]
    %v250 = vld [vmem:[#allocation2 + $0x14] sm:$0xf]
    %v251 = vld [vmem:[#allocation2 + $0x18] sm:$0xff]
    %v252 = vld [vmem:[#allocation2 + $0x20] sm:$0xf]
    %v253 = vld [vmem:[#allocation2 + $0x24] sm:$0xff]
    %v254 = vld [vmem:[#allocation2 + $0x2c] sm:$0xf]
    %v255 = vld [vmem:[#allocation2 + $0x30] sm:$0xff]
    %v256 = vld [vmem:[#allocation2 + $0x38] sm:$0xf]
    %v257 = vld [vmem:[#allocation2 + $0x3c] sm:$0xff]
    %v258 = vld [vmem:[#allocation2 + $0x44] sm:$0xf]
    %v259 = vld [vmem:[#allocation2 + $0x48] sm:$0xff]
    %v260 = vld [vmem:[#allocation2 + $0x50] sm:$0xf]
    %v261 = vld [vmem:[#allocation2 + $0x54] sm:$0xff]
    %v262 = vld [vmem:[#allocation2 + $0x5c] sm:$0xf]
    %v263 = vld [vmem:[#allocation2 + $0x60] sm:$0xff]
    %v264 = vld [vmem:[#allocation2 + $0x68] sm:$0xf]
    %v265 = vld [vmem:[#allocation2 + $0x6c] sm:$0xff]
    %v266 = vld [vmem:[#allocation2 + $0x74] sm:$0xf]
    %v267 = vld [vmem:[#allocation2 + $0x78] sm:$0xff]
    %v268 = vld [vmem:[#allocation2 + $0x80] sm:$0xf]
    %v269 = vld [vmem:[#allocation2 + $0x84] sm:$0xff]
    %v270 = vld [vmem:[#allocation2 + $0x8c] sm:$0xf]
    %v271 = vld [vmem:[#allocation2 + $0x90] sm:$0xff]
    %v272 = vld [vmem:[#allocation2 + $0x98] sm:$0xf]
    %v273 = vld [vmem:[#allocation2 + $0x9c] sm:$0xff]
    %v274 = vld [vmem:[#allocation2 + $0xa4] sm:$0xf]
    %v275 = vld [vmem:[#allocation2 + $0xa8] sm:$0xff]
    %v276 = vld [vmem:[#allocation2 + $0xb0] sm:$0xf]
    %v277 = vld [vmem:[#allocation2 + $0xb4] sm:$0xff]
    %v278 = vld [vmem:[#allocation2 + $0xbc] sm:$0xf]
    %v279 = vld [vmem:[#allocation2 + $0xc0] sm:$0xff]
    %v280 = vld [vmem:[#allocation2 + $0xc8] sm:$0xf]
    %v281 = vld [vmem:[#allocation2 + $0xcc] sm:$0xff]
    %v282 = vld [vmem:[#allocation2 + $0xd4] sm:$0xf]
    %v283 = vld [vmem:[#allocation2 + $0xd8] sm:$0xff]
    %v284 = vld [vmem:[#allocation2 + $0xe0] sm:$0xf]
    %v285 = vld [vmem:[#allocation2 + $0xe4] sm:$0xff]
    %v286 = vld [vmem:[#allocation2 + $0xec] sm:$0xf]
    %v287 = vld [vmem:[#allocation2 + $0xf0] sm:$0xff]
    %v288 = vld [vmem:[#allocation2 + $0xf8] sm:$0xf]
    %v289 = vld [vmem:[#allocation2 + $0xfc] sm:$0xff]
    %v290 = vld [vmem:[#allocation2 + $0x104] sm:$0xf]
    %v291 = vld [vmem:[#allocation2 + $0x108] sm:$0xff]
    %v292 = vld [vmem:[#allocation2 + $0x110] sm:$0xf]
    %v293 = vld [vmem:[#allocation2 + $0x114] sm:$0xff]
    %v294 = vld [vmem:[#allocation2 + $0x11c] sm:$0xf]
    %v295 = vld [vmem:[#allocation2 + $0x120] sm:$0xff]
    %v296 = vld [vmem:[#allocation2 + $0x128] sm:$0xf]
    %v297 = vld [vmem:[#allocation2 + $0x12c] sm:$0xff]
    %v298 = vld [vmem:[#allocation2 + $0x134] sm:$0xf]
    %v299 = vld [vmem:[#allocation2 + $0x138] sm:$0xff]
    %v300 = vld [vmem:[#allocation2 + $0x140] sm:$0xf]
    %v301 = vld [vmem:[#allocation2 + $0x144] sm:$0xff]
    %v302 = vld [vmem:[#allocation2 + $0x14c] sm:$0xf]
    %v303 = vld [vmem:[#allocation2 + $0x150] sm:$0xff]
    %v304 = vld [vmem:[#allocation2 + $0x158] sm:$0xf]
    %v305 = vld [vmem:[#allocation2 + $0x15c] sm:$0xff]
    %v306 = vld [vmem:[#allocation2 + $0x164] sm:$0xf]
    %v307 = vld [vmem:[#allocation2 + $0x168] sm:$0xff]
    %v308 = vld [vmem:[#allocation2 + $0x170] sm:$0xf]
    %v309 = vld [vmem:[#allocation2 + $0x174] sm:$0xff]
    %v310 = vld [vmem:[#allocation2 + $0x17c] sm:$0xf]
    %v311 = vld [vmem:[#allocation2 + $0x180] sm:$0xff]
    %v312 = vld [vmem:[#allocation2 + $0x188] sm:$0xf]
    %v313 = vld [vmem:[#allocation2 + $0x18c] sm:$0xff]
    %v314 = vld [vmem:[#allocation2 + $0x194] sm:$0xf]
    %v315 = vld [vmem:[#allocation2 + $0x198] sm:$0xff]
    %v316 = vld [vmem:[#allocation2 + $0x1a0] sm:$0xf]
    %v317 = vld [vmem:[#allocation2 + $0x1a4] sm:$0xff]
    %v318 = vld [vmem:[#allocation2 + $0x1ac] sm:$0xf]
    %v319 = vld [vmem:[#allocation2 + $0x1b0] sm:$0xff]
    %v320 = vld [vmem:[#allocation2 + $0x1b8] sm:$0xf]
    %v321 = vld [vmem:[#allocation2 + $0x1bc] sm:$0xff]
    %v322 = vld [vmem:[#allocation2 + $0x1c4] sm:$0xf]
    %v323 = vld [vmem:[#allocation2 + $0x1c8] sm:$0xff]
    %v324 = vld [vmem:[#allocation2 + $0x1d0] sm:$0xf]
    %v325 = vld [vmem:[#allocation2 + $0x1d4] sm:$0xff]
    %v326 = vld [vmem:[#allocation2 + $0x1dc] sm:$0xf]
    %v327 = vld [vmem:[#allocation2 + $0x1e0] sm:$0xff]
    %v328 = vld [vmem:[#allocation2 + $0x1e8] sm:$0xf]
    %v329 = vld [vmem:[#allocation2 + $0x1ec] sm:$0xff]
    %v330 = vld [vmem:[#allocation2 + $0x1f4] sm:$0xf]
    %v331 = vld [vmem:[#allocation2 + $0x1f8] sm:$0xff]
    %v332 = vld [vmem:[#allocation2 + $0x200] sm:$0xf]
    %v333 = vld [vmem:[#allocation2 + $0x204] sm:$0xff]
    %v334 = vld [vmem:[#allocation2 + $0x20c] sm:$0xf]
    %v335 = vld [vmem:[#allocation2 + $0x210] sm:$0xff]
    %v336 = vld [vmem:[#allocation2 + $0x218] sm:$0xf]
    %v337 = vld [vmem:[#allocation2 + $0x21c] sm:$0xff]
    %v338 = vld [vmem:[#allocation2 + $0x224] sm:$0xf]
    %v339 = vld [vmem:[#allocation2 + $0x228] sm:$0xff]
    %v340 = vld [vmem:[#allocation2 + $0x230] sm:$0xf]
    %v341 = vld [vmem:[#allocation2 + $0x234] sm:$0xff]
    %v342 = vld [vmem:[#allocation2 + $0x23c] sm:$0xf]
    %v343 = vld [vmem:[#allocation2 + $0x240] sm:$0xff]
    %v344 = vld [vmem:[#allocation2 + $0x248] sm:$0xf]
    %v345 = vld [vmem:[#allocation2 + $0x24c] sm:$0xff]
    %v346 = vld [vmem:[#allocation2 + $0x254] sm:$0xf]
    %v347 = vld [vmem:[#allocation2 + $0x258] sm:$0xff]
    %v348 = vld [vmem:[#allocation2 + $0x260] sm:$0xf]
    %v349 = vld [vmem:[#allocation2 + $0x264] sm:$0xff]
    %v350 = vld [vmem:[#allocation2 + $0x26c] sm:$0xf]
    %v351 = vld [vmem:[#allocation2 + $0x270] sm:$0xff]
    %v352 = vld [vmem:[#allocation2 + $0x278] sm:$0xf]
    %v353 = vld [vmem:[#allocation2 + $0x27c] sm:$0xff]
    %v354 = vld [vmem:[#allocation2 + $0x284] sm:$0xf]
    %v355 = vld [vmem:[#allocation2 + $0x288] sm:$0xff]
    %v356 = vld [vmem:[#allocation2 + $0x290] sm:$0xf]
    %v357 = vld [vmem:[#allocation2 + $0x294] sm:$0xff]
    %v358 = vld [vmem:[#allocation2 + $0x29c] sm:$0xf]
    %v359 = vld [vmem:[#allocation2 + $0x2a0] sm:$0xff]
    %v360 = vld [vmem:[#allocation2 + $0x2a8] sm:$0xf]
    %v361 = vld [vmem:[#allocation2 + $0x2ac] sm:$0xff]
    %v362 = vld [vmem:[#allocation2 + $0x2b4] sm:$0xf]
    %v363 = vld [vmem:[#allocation2 + $0x2b8] sm:$0xff]
    %v364 = vld [vmem:[#allocation2 + $0x2c0] sm:$0xf]
    %v365 = vld [vmem:[#allocation2 + $0x2c4] sm:$0xff]
    %v366 = vld [vmem:[#allocation2 + $0x2cc] sm:$0xf]
    %v367 = vld [vmem:[#allocation2 + $0x2d0] sm:$0xff]
    %v368 = vld [vmem:[#allocation2 + $0x2d8] sm:$0xf]
    %v369 = vld [vmem:[#allocation2 + $0x2dc] sm:$0xff]
    %v370 = vld [vmem:[#allocation2 + $0x2e4] sm:$0xf]
    %v371 = vld [vmem:[#allocation2 + $0x2e8] sm:$0xff]
    %v372 = vld [vmem:[#allocation2 + $0x2f0] sm:$0xf]
    %v373 = vld [vmem:[#allocation2 + $0x2f4] sm:$0xff]
    %v374 = vld [vmem:[#allocation2 + $0x2fc] sm:$0xf]
    %v503 = vunpack.c.l.b16 %v247
    %v504 = vunpack.c.h.b16 %v247
    %v505 = vunpack.c.l.b16 %v248
    %v506 = vunpack.c.l.b16 %v249
    %v507 = vunpack.c.h.b16 %v249
    %v508 = vunpack.c.l.b16 %v250
    %v509 = vunpack.c.l.b16 %v251
    %v510 = vunpack.c.h.b16 %v251
    %v511 = vunpack.c.l.b16 %v252
    %v512 = vunpack.c.l.b16 %v253
    %v513 = vunpack.c.h.b16 %v253
    %v514 = vunpack.c.l.b16 %v254
    %v515 = vunpack.c.l.b16 %v255
    %v516 = vunpack.c.h.b16 %v255
    %v517 = vunpack.c.l.b16 %v256
    %v518 = vunpack.c.l.b16 %v257
    %v519 = vunpack.c.h.b16 %v257
    %v520 = vunpack.c.l.b16 %v258
    %v521 = vunpack.c.l.b16 %v259
    %v522 = vunpack.c.h.b16 %v259
    %v523 = vunpack.c.l.b16 %v260
    %v524 = vunpack.c.l.b16 %v261
    %v525 = vunpack.c.h.b16 %v261
    %v526 = vunpack.c.l.b16 %v262
    %v527 = vunpack.c.l.b16 %v263
    %v528 = vunpack.c.h.b16 %v263
    %v529 = vunpack.c.l.b16 %v264
    %v530 = vunpack.c.l.b16 %v265
    %v531 = vunpack.c.h.b16 %v265
    %v532 = vunpack.c.l.b16 %v266
    %v533 = vunpack.c.l.b16 %v267
    %v534 = vunpack.c.h.b16 %v267
    %v535 = vunpack.c.l.b16 %v268
    %v536 = vunpack.c.l.b16 %v269
    %v537 = vunpack.c.h.b16 %v269
    %v538 = vunpack.c.l.b16 %v270
    %v539 = vunpack.c.l.b16 %v271
    %v540 = vunpack.c.h.b16 %v271
    %v541 = vunpack.c.l.b16 %v272
    %v542 = vunpack.c.l.b16 %v273
    %v543 = vunpack.c.h.b16 %v273
    %v544 = vunpack.c.l.b16 %v274
    %v545 = vunpack.c.l.b16 %v275
    %v546 = vunpack.c.h.b16 %v275
    %v547 = vunpack.c.l.b16 %v276
    %v548 = vunpack.c.l.b16 %v277
    %v549 = vunpack.c.h.b16 %v277
    %v550 = vunpack.c.l.b16 %v278
    %v551 = vunpack.c.l.b16 %v279
    %v552 = vunpack.c.h.b16 %v279
    %v553 = vunpack.c.l.b16 %v280
    %v554 = vunpack.c.l.b16 %v281
    %v555 = vunpack.c.h.b16 %v281
    %v556 = vunpack.c.l.b16 %v282
    %v557 = vunpack.c.l.b16 %v283
    %v558 = vunpack.c.h.b16 %v283
    %v559 = vunpack.c.l.b16 %v284
    %v560 = vunpack.c.l.b16 %v285
    %v561 = vunpack.c.h.b16 %v285
    %v562 = vunpack.c.l.b16 %v286
    %v563 = vunpack.c.l.b16 %v287
    %v564 = vunpack.c.h.b16 %v287
    %v565 = vunpack.c.l.b16 %v288
    %v566 = vunpack.c.l.b16 %v289
    %v567 = vunpack.c.h.b16 %v289
    %v568 = vunpack.c.l.b16 %v290
    %v569 = vunpack.c.l.b16 %v291
    %v570 = vunpack.c.h.b16 %v291
    %v571 = vunpack.c.l.b16 %v292
    %v572 = vunpack.c.l.b16 %v293
    %v573 = vunpack.c.h.b16 %v293
    %v574 = vunpack.c.l.b16 %v294
    %v575 = vunpack.c.l.b16 %v295
    %v576 = vunpack.c.h.b16 %v295
    %v577 = vunpack.c.l.b16 %v296
    %v578 = vunpack.c.l.b16 %v297
    %v579 = vunpack.c.h.b16 %v297
    %v580 = vunpack.c.l.b16 %v298
    %v581 = vunpack.c.l.b16 %v299
    %v582 = vunpack.c.h.b16 %v299
    %v583 = vunpack.c.l.b16 %v300
    %v584 = vunpack.c.l.b16 %v301
    %v585 = vunpack.c.h.b16 %v301
    %v586 = vunpack.c.l.b16 %v302
    %v587 = vunpack.c.l.b16 %v303
    %v588 = vunpack.c.h.b16 %v303
    %v589 = vunpack.c.l.b16 %v304
    %v590 = vunpack.c.l.b16 %v305
    %v591 = vunpack.c.h.b16 %v305
    %v592 = vunpack.c.l.b16 %v306
    %v593 = vunpack.c.l.b16 %v307
    %v594 = vunpack.c.h.b16 %v307
    %v595 = vunpack.c.l.b16 %v308
    %v596 = vunpack.c.l.b16 %v309
    %v597 = vunpack.c.h.b16 %v309
    %v598 = vunpack.c.l.b16 %v310
    %v599 = vunpack.c.l.b16 %v311
    %v600 = vunpack.c.h.b16 %v311
    %v601 = vunpack.c.l.b16 %v312
    %v602 = vunpack.c.l.b16 %v313
    %v603 = vunpack.c.h.b16 %v313
    %v604 = vunpack.c.l.b16 %v314
    %v605 = vunpack.c.l.b16 %v315
    %v606 = vunpack.c.h.b16 %v315
    %v607 = vunpack.c.l.b16 %v316
    %v608 = vunpack.c.l.b16 %v317
    %v609 = vunpack.c.h.b16 %v317
    %v610 = vunpack.c.l.b16 %v318
    %v611 = vunpack.c.l.b16 %v319
    %v612 = vunpack.c.h.b16 %v319
    %v613 = vunpack.c.l.b16 %v320
    %v614 = vunpack.c.l.b16 %v321
    %v615 = vunpack.c.h.b16 %v321
    %v616 = vunpack.c.l.b16 %v322
    %v617 = vunpack.c.l.b16 %v323
    %v618 = vunpack.c.h.b16 %v323
    %v619 = vunpack.c.l.b16 %v324
    %v620 = vunpack.c.l.b16 %v325
    %v621 = vunpack.c.h.b16 %v325
    %v622 = vunpack.c.l.b16 %v326
    %v623 = vunpack.c.l.b16 %v327
    %v624 = vunpack.c.h.b16 %v327
    %v625 = vunpack.c.l.b16 %v328
    %v626 = vunpack.c.l.b16 %v329
    %v627 = vunpack.c.h.b16 %v329
    %v628 = vunpack.c.l.b16 %v330
    %v629 = vunpack.c.l.b16 %v331
    %v630 = vunpack.c.h.b16 %v331
    %v631 = vunpack.c.l.b16 %v332
    %v632 = vunpack.c.l.b16 %v333
    %v633 = vunpack.c.h.b16 %v333
    %v634 = vunpack.c.l.b16 %v334
    %v635 = vunpack.c.l.b16 %v335
    %v636 = vunpack.c.h.b16 %v335
    %v637 = vunpack.c.l.b16 %v336
    %v638 = vunpack.c.l.b16 %v337
    %v639 = vunpack.c.h.b16 %v337
    %v640 = vunpack.c.l.b16 %v338
    %v641 = vunpack.c.l.b16 %v339
    %v642 = vunpack.c.h.b16 %v339
    %v643 = vunpack.c.l.b16 %v340
    %v644 = vunpack.c.l.b16 %v341
    %v645 = vunpack.c.h.b16 %v341
    %v646 = vunpack.c.l.b16 %v342
    %v647 = vunpack.c.l.b16 %v343
    %v648 = vunpack.c.h.b16 %v343
    %v649 = vunpack.c.l.b16 %v344
    %v650 = vunpack.c.l.b16 %v345
    %v651 = vunpack.c.h.b16 %v345
    %v652 = vunpack.c.l.b16 %v346
    %v653 = vunpack.c.l.b16 %v347
    %v654 = vunpack.c.h.b16 %v347
    %v655 = vunpack.c.l.b16 %v348
    %v656 = vunpack.c.l.b16 %v349
    %v657 = vunpack.c.h.b16 %v349
    %v658 = vunpack.c.l.b16 %v350
    %v659 = vunpack.c.l.b16 %v351
    %v660 = vunpack.c.h.b16 %v351
    %v661 = vunpack.c.l.b16 %v352
    %v662 = vunpack.c.l.b16 %v353
    %v663 = vunpack.c.h.b16 %v353
    %v664 = vunpack.c.l.b16 %v354
    %v665 = vunpack.c.l.b16 %v355
    %v666 = vunpack.c.h.b16 %v355
    %v667 = vunpack.c.l.b16 %v356
    %v668 = vunpack.c.l.b16 %v357
    %v669 = vunpack.c.h.b16 %v357
    %v670 = vunpack.c.l.b16 %v358
    %v671 = vunpack.c.l.b16 %v359
    %v672 = vunpack.c.h.b16 %v359
    %v673 = vunpack.c.l.b16 %v360
    %v674 = vunpack.c.l.b16 %v361
    %v675 = vunpack.c.h.b16 %v361
    %v676 = vunpack.c.l.b16 %v362
    %v677 = vunpack.c.l.b16 %v363
    %v678 = vunpack.c.h.b16 %v363
    %v679 = vunpack.c.l.b16 %v364
    %v680 = vunpack.c.l.b16 %v365
    %v681 = vunpack.c.h.b16 %v365
    %v682 = vunpack.c.l.b16 %v366
    %v683 = vunpack.c.l.b16 %v367
    %v684 = vunpack.c.h.b16 %v367
    %v685 = vunpack.c.l.b16 %v368
    %v686 = vunpack.c.l.b16 %v369
    %v687 = vunpack.c.h.b16 %v369
    %v688 = vunpack.c.l.b16 %v370
    %v689 = vunpack.c.l.b16 %v371
    %v690 = vunpack.c.h.b16 %v371
    %v691 = vunpack.c.l.b16 %v372
    %v692 = vunpack.c.l.b16 %v373
    %v693 = vunpack.c.h.b16 %v373
    %v694 = vunpack.c.l.b16 %v374
    %v695 = vpack.c.b16 %v506, %v503
    %v696 = vpack.c.b16 %v507, %v504
    %v697 = vpack.c.b16 %v508, %v505
    %v698 = vpack.c.b16 %v512, %v509
    %v699 = vpack.c.b16 %v513, %v510
    %v700 = vpack.c.b16 %v514, %v511
    %v701 = vpack.c.b16 %v518, %v515
    %v702 = vpack.c.b16 %v519, %v516
    %v703 = vpack.c.b16 %v520, %v517
    %v704 = vpack.c.b16 %v524, %v521
    %v705 = vpack.c.b16 %v525, %v522
    %v706 = vpack.c.b16 %v526, %v523
    %v707 = vpack.c.b16 %v530, %v527
    %v708 = vpack.c.b16 %v531, %v528
    %v709 = vpack.c.b16 %v532, %v529
    %v710 = vpack.c.b16 %v536, %v533
    %v711 = vpack.c.b16 %v537, %v534
    %v712 = vpack.c.b16 %v538, %v535
    %v713 = vpack.c.b16 %v542, %v539
    %v714 = vpack.c.b16 %v543, %v540
    %v715 = vpack.c.b16 %v544, %v541
    %v716 = vpack.c.b16 %v548, %v545
    %v717 = vpack.c.b16 %v549, %v546
    %v718 = vpack.c.b16 %v550, %v547
    %v719 = vpack.c.b16 %v554, %v551
    %v720 = vpack.c.b16 %v555, %v552
    %v721 = vpack.c.b16 %v556, %v553
    %v722 = vpack.c.b16 %v560, %v557
    %v723 = vpack.c.b16 %v561, %v558
    %v724 = vpack.c.b16 %v562, %v559
    %v725 = vpack.c.b16 %v566, %v563
    %v726 = vpack.c.b16 %v567, %v564
    %v727 = vpack.c.b16 %v568, %v565
    %v728 = vpack.c.b16 %v572, %v569
    %v729 = vpack.c.b16 %v573, %v570
    %v730 = vpack.c.b16 %v574, %v571
    %v731 = vpack.c.b16 %v578, %v575
    %v732 = vpack.c.b16 %v579, %v576
    %v733 = vpack.c.b16 %v580, %v577
    %v734 = vpack.c.b16 %v584, %v581
    %v735 = vpack.c.b16 %v585, %v582
    %v736 = vpack.c.b16 %v586, %v583
    %v737 = vpack.c.b16 %v590, %v587
    %v738 = vpack.c.b16 %v591, %v588
    %v739 = vpack.c.b16 %v592, %v589
    %v740 = vpack.c.b16 %v596, %v593
    %v741 = vpack.c.b16 %v597, %v594
    %v742 = vpack.c.b16 %v598, %v595
    %v743 = vpack.c.b16 %v602, %v599
    %v744 = vpack.c.b16 %v603, %v600
    %v745 = vpack.c.b16 %v604, %v601
    %v746 = vpack.c.b16 %v608, %v605
    %v747 = vpack.c.b16 %v609, %v606
    %v748 = vpack.c.b16 %v610, %v607
    %v749 = vpack.c.b16 %v614, %v611
    %v750 = vpack.c.b16 %v615, %v612
    %v751 = vpack.c.b16 %v616, %v613
    %v752 = vpack.c.b16 %v620, %v617
    %v753 = vpack.c.b16 %v621, %v618
    %v754 = vpack.c.b16 %v622, %v619
    %v755 = vpack.c.b16 %v626, %v623
    %v756 = vpack.c.b16 %v627, %v624
    %v757 = vpack.c.b16 %v628, %v625
    %v758 = vpack.c.b16 %v632, %v629
    %v759 = vpack.c.b16 %v633, %v630
    %v760 = vpack.c.b16 %v634, %v631
    %v761 = vpack.c.b16 %v638, %v635
    %v762 = vpack.c.b16 %v639, %v636
    %v763 = vpack.c.b16 %v640, %v637
    %v764 = vpack.c.b16 %v644, %v641
    %v765 = vpack.c.b16 %v645, %v642
    %v766 = vpack.c.b16 %v646, %v643
    %v767 = vpack.c.b16 %v650, %v647
    %v768 = vpack.c.b16 %v651, %v648
    %v769 = vpack.c.b16 %v652, %v649
    %v770 = vpack.c.b16 %v656, %v653
    %v771 = vpack.c.b16 %v657, %v654
    %v772 = vpack.c.b16 %v658, %v655
    %v773 = vpack.c.b16 %v662, %v659
    %v774 = vpack.c.b16 %v663, %v660
    %v775 = vpack.c.b16 %v664, %v661
    %v776 = vpack.c.b16 %v668, %v665
    %v777 = vpack.c.b16 %v669, %v666
    %v778 = vpack.c.b16 %v670, %v667
    %v779 = vpack.c.b16 %v674, %v671
    %v780 = vpack.c.b16 %v675, %v672
    %v781 = vpack.c.b16 %v676, %v673
    %v782 = vpack.c.b16 %v680, %v677
    %v783 = vpack.c.b16 %v681, %v678
    %v784 = vpack.c.b16 %v682, %v679
    %v785 = vpack.c.b16 %v686, %v683
    %v786 = vpack.c.b16 %v687, %v684
    %v787 = vpack.c.b16 %v688, %v685
    %v788 = vpack.c.b16 %v692, %v689
    %v789 = vpack.c.b16 %v693, %v690
    %v790 = vpack.c.b16 %v694, %v691
    %887 = vmatpush.bf16.msra.mxu0 %v716
    %888 = vmatpush.bf16.msra.mxu0 %v713
    %889 = vmatpush.bf16.msra.mxu0 %v710
    %890 = vmatpush.bf16.msra.mxu0 %v707
    %891 = vmatpush.bf16.msra.mxu0 %v704
    %892 = vmatpush.bf16.msra.mxu0 %v701
    %893 = vmatpush.bf16.msra.mxu0 %v698
    %894 = vmatpush.bf16.msra.mxu0 %v695
    %895 = vmatmul.bf16.gmra.mxu0 %v243
    %v896 = vpop.f32.mrf.mxu0
    %v897 = vadd.f32 0.0, %v896
    %v898 = vpop.f32.mrf.mxu0
    %899 = vdwg.mxu0
    %900 = vmatpush.bf16.msra.mxu0 %v740
    %901 = vmatpush.bf16.msra.mxu0 %v737
    %902 = vmatpush.bf16.msra.mxu0 %v734
    %903 = vmatpush.bf16.msra.mxu0 %v731
    %904 = vmatpush.bf16.msra.mxu0 %v728
    %905 = vmatpush.bf16.msra.mxu0 %v725
    %906 = vmatpush.bf16.msra.mxu0 %v722
    %907 = vmatpush.bf16.msra.mxu0 %v719
    %908 = vmatmul.bf16.gmra.mxu0 %v244
    %v909 = vpop.f32.mrf.mxu0
    %v910 = vadd.f32 %v897, %v909
    %v911 = vpop.f32.mrf.mxu0
    %912 = vdwg.mxu0
    %913 = vmatpush.bf16.msra.mxu0 %v764
    %914 = vmatpush.bf16.msra.mxu0 %v761
    %915 = vmatpush.bf16.msra.mxu0 %v758
    %916 = vmatpush.bf16.msra.mxu0 %v755
    %917 = vmatpush.bf16.msra.mxu0 %v752
    %918 = vmatpush.bf16.msra.mxu0 %v749
    %919 = vmatpush.bf16.msra.mxu0 %v746
    %920 = vmatpush.bf16.msra.mxu0 %v743
    %921 = vmatmul.bf16.gmra.mxu0 %v245
    %v922 = vpop.f32.mrf.mxu0
    %v923 = vadd.f32 %v910, %v922
    %v924 = vpop.f32.mrf.mxu0
    %925 = vdwg.mxu0
    %926 = vmatpush.bf16.msra.mxu0 %v788
    %927 = vmatpush.bf16.msra.mxu0 %v785
    %928 = vmatpush.bf16.msra.mxu0 %v782
    %929 = vmatpush.bf16.msra.mxu0 %v779
    %930 = vmatpush.bf16.msra.mxu0 %v776
    %931 = vmatpush.bf16.msra.mxu0 %v773
    %932 = vmatpush.bf16.msra.mxu0 %v770
    %933 = vmatpush.bf16.msra.mxu0 %v767
    %934 = vmatmul.bf16.gmra.mxu0 %v246
    %v935 = vpop.f32.mrf.mxu0
    %v936 = vadd.f32 %v923, %v935
    %v937 = vpop.f32.mrf.mxu0
    %938 = vdwg.mxu0
    %939 = vmatpush.bf16.msra.mxu0 %v717
    %940 = vmatpush.bf16.msra.mxu0 %v714
    %941 = vmatpush.bf16.msra.mxu0 %v711
    %942 = vmatpush.bf16.msra.mxu0 %v708
    %943 = vmatpush.bf16.msra.mxu0 %v705
    %944 = vmatpush.bf16.msra.mxu0 %v702
    %945 = vmatpush.bf16.msra.mxu0 %v699
    %946 = vmatpush.bf16.msra.mxu0 %v696
    %947 = vmatmul.bf16.gmra.mxu0 %v243
    %v948 = vpop.f32.mrf.mxu0
    %v949 = vadd.f32 0.0, %v948
    %v950 = vpop.f32.mrf.mxu0
    %951 = vdwg.mxu0
    %952 = vmatpush.bf16.msra.mxu0 %v741
    %953 = vmatpush.bf16.msra.mxu0 %v738
    %954 = vmatpush.bf16.msra.mxu0 %v735
    %955 = vmatpush.bf16.msra.mxu0 %v732
    %956 = vmatpush.bf16.msra.mxu0 %v729
    %957 = vmatpush.bf16.msra.mxu0 %v726
    %958 = vmatpush.bf16.msra.mxu0 %v723
    %959 = vmatpush.bf16.msra.mxu0 %v720
    %960 = vmatmul.bf16.gmra.mxu0 %v244
    %v961 = vpop.f32.mrf.mxu0
    %v962 = vadd.f32 %v949, %v961
    %v963 = vpop.f32.mrf.mxu0
    %964 = vdwg.mxu0
    %965 = vmatpush.bf16.msra.mxu0 %v765
    %966 = vmatpush.bf16.msra.mxu0 %v762
    %967 = vmatpush.bf16.msra.mxu0 %v759
    %968 = vmatpush.bf16.msra.mxu0 %v756
    %969 = vmatpush.bf16.msra.mxu0 %v753
    %970 = vmatpush.bf16.msra.mxu0 %v750
    %971 = vmatpush.bf16.msra.mxu0 %v747
    %972 = vmatpush.bf16.msra.mxu0 %v744
    %973 = vmatmul.bf16.gmra.mxu0 %v245
    %v974 = vpop.f32.mrf.mxu0
    %v975 = vadd.f32 %v962, %v974
    %v976 = vpop.f32.mrf.mxu0
    %977 = vdwg.mxu0
    %978 = vmatpush.bf16.msra.mxu0 %v789
    %979 = vmatpush.bf16.msra.mxu0 %v786
    %980 = vmatpush.bf16.msra.mxu0 %v783
    %981 = vmatpush.bf16.msra.mxu0 %v780
    %982 = vmatpush.bf16.msra.mxu0 %v777
    %983 = vmatpush.bf16.msra.mxu0 %v774
    %984 = vmatpush.bf16.msra.mxu0 %v771
    %985 = vmatpush.bf16.msra.mxu0 %v768
    %986 = vmatmul.bf16.gmra.mxu0 %v246
    %v987 = vpop.f32.mrf.mxu0
    %v988 = vadd.f32 %v975, %v987
    %v989 = vpop.f32.mrf.mxu0
    %990 = vdwg.mxu0
    %991 = vmatpush.bf16.msra.mxu0 %v718
    %992 = vmatpush.bf16.msra.mxu0 %v715
    %993 = vmatpush.bf16.msra.mxu0 %v712
    %994 = vmatpush.bf16.msra.mxu0 %v709
    %995 = vmatpush.bf16.msra.mxu0 %v706
    %996 = vmatpush.bf16.msra.mxu0 %v703
    %997 = vmatpush.bf16.msra.mxu0 %v700
    %998 = vmatpush.bf16.msra.mxu0 %v697
    %999 = vmatmul.bf16.gmra.mxu0 %v243
    %v1000 = vpop.f32.mrf.mxu0
    %v1001 = vadd.f32 0.0, %v1000
    %v1002 = vpop.f32.mrf.mxu0
    %1003 = vdwg.mxu0
    %1004 = vmatpush.bf16.msra.mxu0 %v742
    %1005 = vmatpush.bf16.msra.mxu0 %v739
    %1006 = vmatpush.bf16.msra.mxu0 %v736
    %1007 = vmatpush.bf16.msra.mxu0 %v733
    %1008 = vmatpush.bf16.msra.mxu0 %v730
    %1009 = vmatpush.bf16.msra.mxu0 %v727
    %1010 = vmatpush.bf16.msra.mxu0 %v724
    %1011 = vmatpush.bf16.msra.mxu0 %v721
    %1012 = vmatmul.bf16.gmra.mxu0 %v244
    %v1013 = vpop.f32.mrf.mxu0
    %v1014 = vadd.f32 %v1001, %v1013
    %v1015 = vpop.f32.mrf.mxu0
    %1016 = vdwg.mxu0
    %1017 = vmatpush.bf16.msra.mxu0 %v766
    %1018 = vmatpush.bf16.msra.mxu0 %v763
    %1019 = vmatpush.bf16.msra.mxu0 %v760
    %1020 = vmatpush.bf16.msra.mxu0 %v757
    %1021 = vmatpush.bf16.msra.mxu0 %v754
    %1022 = vmatpush.bf16.msra.mxu0 %v751
    %1023 = vmatpush.bf16.msra.mxu0 %v748
    %1024 = vmatpush.bf16.msra.mxu0 %v745
    %1025 = vmatmul.bf16.gmra.mxu0 %v245
    %v1026 = vpop.f32.mrf.mxu0
    %v1027 = vadd.f32 %v1014, %v1026
    %v1028 = vpop.f32.mrf.mxu0
    %1029 = vdwg.mxu0
    %1030 = vmatpush.bf16.msra.mxu0 %v790
    %1031 = vmatpush.bf16.msra.mxu0 %v787
    %1032 = vmatpush.bf16.msra.mxu0 %v784
    %1033 = vmatpush.bf16.msra.mxu0 %v781
    %1034 = vmatpush.bf16.msra.mxu0 %v778
    %1035 = vmatpush.bf16.msra.mxu0 %v775
    %1036 = vmatpush.bf16.msra.mxu0 %v772
    %1037 = vmatpush.bf16.msra.mxu0 %v769
    %1038 = vmatmul.bf16.gmra.mxu0 %v246
    %v1039 = vpop.f32.mrf.mxu0
    %v1040 = vadd.f32 %v1027, %v1039
    %v1041 = vpop.f32.mrf.mxu0
    %1042 = vdwg.mxu0
    %v1045 = vunpack.c.l.b16 %v237
    %v1046 = vunpack.c.h.b16 %v237
    %v1047 = vunpack.c.l.b16 %v238
    %v1048 = vpack.c.b16 %v1045, %v1045
    %v1049 = vpack.c.b16 %v1046, %v1046
    %v1050 = vpack.c.b16 %v1047, %v1047
    %vm1051 = vcmask 64512
    %v1053 = vsel %vm1051, %v236, 0
    %vm1055 = vcmask 1043456
    %v1057 = vsel %vm1055, %v1048, 0
    %v1060 = vsel %vm1055, %v1049, 0
    %v1063 = vsel %vm1055, %v1050, 0
    %1065 = vmatpush.bf16.msra.mxu0 0
    %1066 = vmatpush.bf16.msra.mxu0 0
    %1067 = vmatpush.bf16.msra.mxu0 0
    %1068 = vmatpush.bf16.msra.mxu0 0
    %1069 = vmatpush.bf16.msra.mxu0 0
    %1070 = vmatpush.bf16.msra.mxu0 0
    %1071 = vmatpush.bf16.msra.mxu0 0
    %1072 = vmatpush.bf16.msra.mxu0 %v1057
    %1073 = vmatmul.bf16.gmra.mxu0 %v1053
    %v1074 = vpop.f32.mrf.mxu0
    %v1075 = vadd.f32 %v936, %v1074
    %v1076 = vpop.f32.mrf.mxu0
    %1077 = vdwg.mxu0
    %1078 = vmatpush.bf16.msra.mxu0 0
    %1079 = vmatpush.bf16.msra.mxu0 0
    %1080 = vmatpush.bf16.msra.mxu0 0
    %1081 = vmatpush.bf16.msra.mxu0 0
    %1082 = vmatpush.bf16.msra.mxu0 0
    %1083 = vmatpush.bf16.msra.mxu0 0
    %1084 = vmatpush.bf16.msra.mxu0 0
    %1085 = vmatpush.bf16.msra.mxu0 %v1060
    %1086 = vmatmul.bf16.gmra.mxu0 %v1053
    %v1087 = vpop.f32.mrf.mxu0
    %v1088 = vadd.f32 %v988, %v1087
    %v1089 = vpop.f32.mrf.mxu0
    %1090 = vdwg.mxu0
    %1091 = vmatpush.bf16.msra.mxu0 0
    %1092 = vmatpush.bf16.msra.mxu0 0
    %1093 = vmatpush.bf16.msra.mxu0 0
    %1094 = vmatpush.bf16.msra.mxu0 0
    %1095 = vmatpush.bf16.msra.mxu0 0
    %1096 = vmatpush.bf16.msra.mxu0 0
    %1097 = vmatpush.bf16.msra.mxu0 0
    %1098 = vmatpush.bf16.msra.mxu0 %v1063
    %1099 = vmatmul.bf16.gmra.mxu0 %v1053
    %v1100 = vpop.f32.mrf.mxu0
    %v1101 = vadd.f32 %v1040, %v1100
    %v1102 = vpop.f32.mrf.mxu0
    %1103 = vdwg.mxu0
    %v1104 = vld [vmem:[%s6] sm:$0x7]
    %v1106 = vperm.slane %v1104, 0
    %v1107 = vperm.slane %v1104, 1
    %v1108 = vperm.slane %v1104, 2
    %v1112 = vadd.f32 %v1075, %v1106
    %v1113 = vadd.f32 %v1088, %v1107
    %v1114 = vadd.f32 %v1101, %v1108
    %v1115 = vmax.f32 %v1112, 0.0
    %v1116 = vmax.f32 %v1113, 0.0
    %v1117 = vmax.f32 %v1114, 0.0
    %v1118 = vld [vmem:[#allocation12] sm:$0x7]
    %v1120 = vperm.slane %v1118, 0
    %v1121 = vperm.slane %v1118, 1
    %v1122 = vperm.slane %v1118, 2
    %v1126 = vmul.f32 %v1115, %v1120
    %v1127 = vmul.f32 %v1116, %v1121
    %v1128 = vmul.f32 %v1117, %v1122
    %v1129 = vsel %vm1055, %v1126, 0.0
    %v1130 = vsel %vm1055, %v1127, 0.0
    %v1131 = vadd.f32 %v1129, %v1130
    %v1132 = vsel %vm1055, %v1128, 0.0
    %v1133 = vadd.f32 %v1131, %v1132
    %1134 = vadd.xlane.f32.xlu0 %v1133
    %v1135 = vpop.xlane.xlu0 %1134
    %s1136 = sld [smem:[#allocation4]]
    %v1137 = vstv %s1136
    %v1138 = vadd.f32 %v1135, %v1137
    %vm1139 = vcmask 3072
    %1140 = vst.msk [vmem:[%s9] sm:$0xf] %vm1139, %v1138
    // Predicated region
    $region58: #{tpu_custom_call.1} parent=1 // pred_check
      _
    $region59: #{tpu_custom_call.1} parent=1 // pred_check_branch
      %1142 = sbr.rel (0) target = $region61
    $region60: #{tpu_custom_call.1} parent=1 // pred_region
      _
    $region61: #{tpu_custom_call.1} parent=1 // pred_fallthru
      _
    // Predicated region
    $region62: #{tpu_custom_call.1} parent=1 // pred_check
      _
    $region63: #{tpu_custom_call.1} parent=1 // pred_check_branch
      %1144 = sbr.rel (0) target = $region65
    $region64: #{tpu_custom_call.1} parent=1 // pred_region
      _
    $region65: #{tpu_custom_call.1} parent=1 // pred_fallthru
      _
    %1145 = vsyncpa [#allocation6], 1
    %1146 = vsyncpa [#allocation8], 1
    %1147 = vsyncpa [#allocation11], 1
  %1148 = vsyncmov [#allocation3]
  %s1149 = vpop.sfrf %1148
  %p1150 = scmp.eq.s32.totalorder %s1149, 0
  %p1151 = pneg %p1150
  %1153 = shalt.err (%p1151)

</llo_original>
